<compile_context>
chip_gen: v6e
topology: v6e:2x2x1
jax: 0.10.0
libtpu: 0.0.40
codegen_flags: <defaults>
</compile_context>

<pallas_src>
import functools
import math

import jax
import jax.numpy as jnp
from jax import lax
from jax.experimental import pallas as pl
from jax.experimental.pallas import tpu as pltpu


def _round_up(x: int, m: int) -> int:
    return ((x + m - 1) // m) * m


def _pick_tile(dim: int, candidates, max_waste_frac: float = 0.125) -> int:
    """Largest candidate whose padding waste is <= max_waste_frac of dim;
    falls back to the minimal-padding candidate (prefer larger on ties)."""
    for c in candidates:  # descending
        if _round_up(dim, c) - dim <= max_waste_frac * dim:
            return c
    return min(candidates, key=lambda c: (_round_up(dim, c), -c))


def _make_linear_kernel(has_bias: bool, multi_k: bool, use_scratch: bool):
    """Builds the kernel for one (tm, tn) output tile.

    Ref order: x, w, [bias], out, [acc scratch].
    x tile [tm, tk], w tile [tn, tk] (PyTorch [O, K] layout kept as-is);
    K axes of both are contracted on the MXU (trans_b matmul)."""

    def kernel(*refs):
        i = 0
        x_ref = refs[i]; i += 1
        w_ref = refs[i]; i += 1
        b_ref = None
        if has_bias:
            b_ref = refs[i]; i += 1
        o_ref = refs[i]; i += 1
        acc_ref = refs[i] if use_scratch else o_ref

        part = lax.dot_general(
            x_ref[...], w_ref[...],
            dimension_numbers=(((1,), (1,)), ((), ())),
            preferred_element_type=jnp.float32,
        )

        if not multi_k:
            # Single K step: no accumulator at all, bias rides the store.
            if has_bias:
                part = part + b_ref[...]
            o_ref[...] = part.astype(o_ref.dtype)
            return

        k = pl.program_id(2)

        @pl.when(k == 0)
        def _():
            acc_ref[...] = jnp.zeros_like(acc_ref)

        acc_ref[...] += part

        if has_bias or use_scratch:
            @pl.when(k == pl.num_programs(2) - 1)
            def _():
                res = acc_ref[...]
                if has_bias:
                    res = res + b_ref[...]
                o_ref[...] = res.astype(o_ref.dtype)
        # else: o_ref IS the f32 accumulator; nothing left to do.

    return kernel


@functools.partial(jax.jit, static_argnames=("compute_dtype",))
def sum2_linear(x, weight, bias=None, *, compute_dtype=None):
    """Pallas equivalent of Sum2_Linear.forward == F.linear(x, weight, bias).

    x:      [..., K]
    weight: [O, K]   (PyTorch F.linear convention, kept as-is — no transpose)
    bias:   [O] or None
    returns [..., O] = x @ W^T + b
    """
    *lead, K = x.shape
    O, K2 = weight.shape
    assert K == K2, (K, K2)
    out_dtype = x.dtype

    x2 = x.reshape(-1, K)
    N = x2.shape[0]

    if compute_dtype is not None:  # e.g. jnp.bfloat16 on v6e / v7x
        x2 = x2.astype(compute_dtype)
        weight = weight.astype(compute_dtype)

    # ---- tile selection -----------------------------------------------------
    Mp0 = _round_up(max(N, 1), 8)
    Kp0 = _round_up(K, 128)
    Op0 = _round_up(O, 128)

    # M: minimise padding (sublane dim only needs 8-alignment).
    tm = Mp0 if Mp0 <= 512 else _pick_tile(
        Mp0, (512, 448, 384, 320, 256, 192, 128))
    # O: lane-dense; take the whole (padded) O when it fits.
    tn = Op0 if Op0 <= 1024 else _pick_tile(
        Op0, (1024, 896, 768, 640, 512, 384, 256, 128))
    # K: collapse the reduction to one grid step whenever K fits.
    tk = Kp0 if Kp0 <= 2048 else _pick_tile(
        Kp0, (2048, 1792, 1536, 1280, 1024, 768, 512, 256, 128))

    Np = _round_up(N, tm)
    Kp = _round_up(K, tk)
    Op = _round_up(O, tn)
    grid_m, grid_n, nk = Np // tm, Op // tn, Kp // tk

    # v7x: keep >= 2 parallel output blocks when possible so both TensorCores
    # get work (splitting is exact because grid_m == grid_n == 1 here).
    if grid_m * grid_n == 1:
        if tn >= 256 and (tn // 2) % 128 == 0:
            tn //= 2
            grid_n = 2
        elif tm >= 16 and (tm // 2) % 8 == 0:
            tm //= 2
            grid_m = 2

    # ---- padding (only when needed; weight is padded in-place, not transposed)
    if (Np, Kp) != (N, K):
        x2 = jnp.pad(x2, ((0, Np - N), (0, Kp - K)))
    w2 = weight
    if (Op, Kp) != (O, K):
        w2 = jnp.pad(w2, ((0, Op - O), (0, Kp - K)))

    has_bias = bias is not None
    multi_k = nk > 1
    use_scratch = multi_k and (jnp.dtype(out_dtype) != jnp.dtype(jnp.float32))

    args = [x2, w2]
    if has_bias:
        b2 = bias.astype(jnp.float32).reshape(1, O)
        if Op != O:
            b2 = jnp.pad(b2, ((0, 0), (0, Op - O)))
        args.append(b2)

    # ---- grid / specs ---------------------------------------------------------
    if multi_k:
        in_specs = [
            pl.BlockSpec((tm, tk), lambda i, j, k: (i, k)),   # x tile
            pl.BlockSpec((tn, tk), lambda i, j, k: (j, k)),   # W tile ([O,K])
        ]
        if has_bias:
            in_specs.append(pl.BlockSpec((1, tn), lambda i, j, k: (0, j)))
        out_specs = pl.BlockSpec((tm, tn), lambda i, j, k: (i, j))
        grid = (grid_m, grid_n, nk)
        dims = ("parallel", "parallel", "arbitrary")
    else:
        in_specs = [
            pl.BlockSpec((tm, tk), lambda i, j: (i, 0)),
            pl.BlockSpec((tn, tk), lambda i, j: (j, 0)),
        ]
        if has_bias:
            in_specs.append(pl.BlockSpec((1, tn), lambda i, j: (0, j)))
        out_specs = pl.BlockSpec((tm, tn), lambda i, j: (i, j))
        grid = (grid_m, grid_n)
        dims = ("parallel", "parallel")

    scratch_shapes = [pltpu.VMEM((tm, tn), jnp.float32)] if use_scratch else []

    # ---- VMEM budget (double-buffered inputs/outputs + optional acc) ---------
    isz_in = x2.dtype.itemsize
    isz_out = jnp.dtype(out_dtype).itemsize
    vmem_bytes = (
        2 * (tm * tk + tn * tk) * isz_in
        + 2 * tm * tn * isz_out
        + (2 * 8 * tn * 4 if has_bias else 0)
        + (tm * tn * 4 if use_scratch else 0)
    )
    vmem_limit = int(min(max(vmem_bytes + (8 << 20), 32 << 20), 56 << 20))

    cost = pl.CostEstimate(
        flops=2 * N * K * O,
        transcendentals=0,
        bytes_accessed=(
            Np * Kp * isz_in * grid_n      # x re-read per output-column block
            + Op * Kp * isz_in * grid_m    # W re-read per output-row block
            + Np * Op * isz_out
        ),
    )

    out = pl.pallas_call(
        _make_linear_kernel(has_bias, multi_k, use_scratch),
        out_shape=jax.ShapeDtypeStruct((Np, Op), out_dtype),
        grid=grid,
        in_specs=in_specs,
        out_specs=out_specs,
        scratch_shapes=scratch_shapes,
        compiler_params=pltpu.CompilerParams(
            dimension_semantics=dims,
            vmem_limit_bytes=vmem_limit,
        ),
        cost_estimate=cost,
    )(*args)

    out = out[:N, :O]
    return out.reshape(*lead, O)


def init_params(key, in_channels, out_channels):
    """Deterministic init matching the module defaults:
    weight: kaiming_uniform with a=sqrt(5) over fan=in_channels,
    bias:   U(-1/sqrt(in_channels), +1/sqrt(in_channels))."""
    kw, kb = jax.random.split(key)
    a = math.sqrt(5.0)
    bound_w = math.sqrt(6.0 / ((1.0 + a * a) * in_channels))
    weight = jax.random.uniform(
        kw, (out_channels, in_channels), jnp.float32, -bound_w, bound_w
    )
    bound_b = 1.0 / math.sqrt(in_channels)
    bias = jax.random.uniform(
        kb, (out_channels,), jnp.float32, -bound_b, bound_b
    )
    return weight, bias


if __name__ == "__main__":
    key = jax.random.PRNGKey(0)
    k_x1, k_p1, k_x2, k_p2, k_x3, k_p3, k_x4, k_p4 = jax.random.split(key, 8)

    # --- 1) small shape matching the module's regime: single-k kernel --------
    N1, K1, O1 = 8, 32, 32
    x1 = jax.random.normal(k_x1, (N1, K1), jnp.float32)
    w1, b1 = init_params(k_p1, K1, O1)
    y1 = jax.block_until_ready(sum2_linear(x1, w1, b1))
    y1_ref = x1 @ w1.T + b1
    assert y1.shape == (N1, O1)
    assert jnp.allclose(y1, y1_ref, atol=1e-5, rtol=1e-5)

    # --- 1b) bias-free kernel variant -----------------------------------------
    y1n = jax.block_until_ready(sum2_linear(x1, w1, None))
    assert jnp.allclose(y1n, x1 @ w1.T, atol=1e-5, rtol=1e-5)

    # --- 2) non-aligned N/O, K collapses to one k-step, 2 output blocks -------
    N2, K2, O2 = 260, 1024, 136
    x2 = jax.random.normal(k_x2, (N2, K2), jnp.float32)
    w2, b2 = init_params(k_p2, K2, O2)
    y2 = jax.block_until_ready(sum2_linear(x2, w2, b2))
    y2_ref = jnp.dot(x2, w2.T, precision=jax.lax.Precision.HIGHEST) + b2
    assert y2.shape == (N2, O2)
    assert jnp.allclose(y2, y2_ref, atol=1e-3, rtol=1e-3)

    # --- 3) large K: multi-k reduction accumulating directly into o_ref -------
    N3, K3, O3 = 96, 4160, 200
    x3 = jax.random.normal(k_x3, (N3, K3), jnp.float32)
    w3, b3 = init_params(k_p3, K3, O3)
    y3 = jax.block_until_ready(sum2_linear(x3, w3, b3))
    y3_ref = jnp.dot(x3, w3.T, precision=jax.lax.Precision.HIGHEST) + b3
    assert y3.shape == (N3, O3)
    assert jnp.allclose(y3, y3_ref, atol=2e-3, rtol=2e-3)

    # --- 4) bf16 inputs + multi-k: exercises the f32 scratch-accumulator path --
    N4, K4, O4 = 16, 4160, 64
    x4 = jax.random.normal(k_x4, (N4, K4), jnp.float32).astype(jnp.bfloat16)
    w4, b4 = init_params(k_p4, K4, O4)
    w4b = w4.astype(jnp.bfloat16)
    y4 = jax.block_until_ready(sum2_linear(x4, w4b, b4))
    y4_ref = x4.astype(jnp.float32) @ w4b.astype(jnp.float32).T + b4
    assert y4.shape == (N4, O4)
    assert jnp.allclose(y4.astype(jnp.float32), y4_ref, atol=5e-2, rtol=5e-2)

    print("KERNEL_OK")
</pallas_src>

<mosaic_0001>
module attributes {stable_mosaic.version = 11 : i64} {
  func.func @kernel(%arg0: i32, %arg1: i32, %arg2: memref<8x128xf32, #tpu.memory_space<vmem>>, %arg3: memref<128x128xf32, #tpu.memory_space<vmem>>, %arg4: memref<1x128xf32, #tpu.memory_space<vmem>>, %arg5: memref<8x128xf32, #tpu.memory_space<vmem>>) attributes {dimension_semantics = [#tpu.dimension_semantics<parallel>, #tpu.dimension_semantics<parallel>], iteration_bounds = array<i64: 1, 1>, scalar_prefetch = 0 : i64, scratch_operands = 0 : i64, tpu.core_type = #tpu.core_type<tc>, window_params = [{transform_indices = @transform_0, window_bounds = array<i64: 8, 128>}, {transform_indices = @transform_1, window_bounds = array<i64: 128, 128>}, {transform_indices = @transform_2, window_bounds = array<i64: 1, 128>}, {transform_indices = @transform_3, window_bounds = array<i64: 8, 128>}]} {
    %c0 = arith.constant 0 : index
    %c0_0 = arith.constant 0 : index
    %0 = vector.load %arg2[%c0, %c0_0] : memref<8x128xf32, #tpu.memory_space<vmem>>, vector<8x128xf32>
    %c0_1 = arith.constant 0 : index
    %c0_2 = arith.constant 0 : index
    %1 = vector.load %arg3[%c0_1, %c0_2] : memref<128x128xf32, #tpu.memory_space<vmem>>, vector<128x128xf32>
    %cst = arith.constant dense<0.000000e+00> : vector<8x128xf32>
    %2 = tpu.matmul %0, %1, %cst {dimension_numbers = #tpu.dot_dimension_numbers<[1], [1], [0], [0], [0, 0, 1, 0], [], []>} : vector<8x128xf32>, vector<128x128xf32>, vector<8x128xf32> -> vector<8x128xf32>
    %c0_3 = arith.constant 0 : index
    %c0_4 = arith.constant 0 : index
    %3 = vector.load %arg4[%c0_3, %c0_4] : memref<1x128xf32, #tpu.memory_space<vmem>>, vector<1x128xf32>
    %4 = vector.broadcast %3 : vector<1x128xf32> to vector<8x128xf32>
    %5 = arith.addf %2, %4 : vector<8x128xf32>
    %c0_5 = arith.constant 0 : index
    %c0_6 = arith.constant 0 : index
    %6 = vector.load %arg5[%c0_5, %c0_6] : memref<8x128xf32, #tpu.memory_space<vmem>>, vector<8x128xf32>
    tpu.vector_store %arg5[%c0_5, %c0_6], %5 {strides = array<i32>} : memref<8x128xf32, #tpu.memory_space<vmem>>, vector<8x128xf32>,
    return
  }
  func.func @transform_0(%arg0: i32, %arg1: i32) -> (i32, i32) {
    %c0_i32 = arith.constant 0 : i32
    %c0_i32_0 = arith.constant 0 : i32
    return %arg0, %c0_i32 : i32, i32
  }
  func.func @transform_1(%arg0: i32, %arg1: i32) -> (i32, i32) {
    %c0_i32 = arith.constant 0 : i32
    %c0_i32_0 = arith.constant 0 : i32
    return %arg1, %c0_i32 : i32, i32
  }
  func.func @transform_2(%arg0: i32, %arg1: i32) -> (i32, i32) {
    %c0_i32 = arith.constant 0 : i32
    %c0_i32_0 = arith.constant 0 : i32
    return %c0_i32, %arg1 : i32, i32
  }
  func.func @transform_3(%arg0: i32, %arg1: i32) -> (i32, i32) {
    %c0_i32 = arith.constant 0 : i32
    return %arg0, %arg1 : i32, i32
  }
}

</mosaic_0001>

<llo_original>
// kernel: sum2_linear.1
$region0: #{sum2_linear.1}
  #allocation0 [shape = 'u32[]', space=smem, size = 0x4, offset = 0x4, fixed_abs, tag = 'smem constant byte address 0x4 - core index']
  #allocation1 [shape = 'u32[144,128]{1,0:T(1,128)}', space=vmem, size = 0x12000, scoped, tag = 'internal scratch']
  %s0 = inlined_call_operand.vmem [shape: f32[8,128], index: 0, kind: input, shape index: {}]
  %s1 = inlined_call_operand.vmem [shape: f32[128,128], index: 1, kind: input, shape index: {}]
  %s2 = inlined_call_operand.vmem [shape: f32[1,128], index: 2, kind: input, shape index: {}]
  %s3 = inlined_call_operand.hbm [shape: f32[8,128], index: 3, kind: output, shape index: {}]
  %s4 = sld [smem:[#allocation0]]
  $region22: #{sum2_linear.1} parent=0
    _
  %s6 = ssub.s32 1, %s4
  %s7 = scalar_select 0, %s6, %s4
  $region1: #{sum2_linear.1} parent=0
    #allocation2 [shape = 'u8[4096]{0}', space=vmem, size = 0x1000, scoped, tag = 'output window, operand 0, single buffered']
    #allocation3 [shape = 's32[1]{0}', space=sflag, size = 0x4, scoped, tag = 'scoped memory for sum2_linear.1']
    %8 = vsyncpa [#allocation3], 0
    // Predicated region
    $region2: #{sum2_linear.1} parent=1 // pred_check
      _
    $region3: #{sum2_linear.1} parent=1 // pred_check_branch
      %10 = sbr.rel (0) target = $region5
    $region4: #{sum2_linear.1} parent=1 // pred_region
      _
    $region5: #{sum2_linear.1} parent=1 // pred_fallthru
      _
    // Predicated region
    $region6: #{sum2_linear.1} parent=1 // pred_check
      _
    $region7: #{sum2_linear.1} parent=1 // pred_check_branch
      %12 = sbr.rel (0) target = $region9
    $region8: #{sum2_linear.1} parent=1 // pred_region
      _
    $region9: #{sum2_linear.1} parent=1 // pred_fallthru
      _
    // Predicated region
    $region10: #{sum2_linear.1} parent=1 // pred_check
      _
    $region11: #{sum2_linear.1} parent=1 // pred_check_branch
      %14 = sbr.rel (0) target = $region13
    $region12: #{sum2_linear.1} parent=1 // pred_region
      _
    $region13: #{sum2_linear.1} parent=1 // pred_fallthru
      _
    %v15 = vld [vmem:[%s0] sm:$0xff]
    %v16 = vld [vmem:[%s1] sm:$0xff]
    %v17 = vld [vmem:[%s1 + $0x8] sm:$0xff]
    %v18 = vld [vmem:[%s1 + $0x10] sm:$0xff]
    %v19 = vld [vmem:[%s1 + $0x18] sm:$0xff]
    %v20 = vld [vmem:[%s1 + $0x20] sm:$0xff]
    %v21 = vld [vmem:[%s1 + $0x28] sm:$0xff]
    %v22 = vld [vmem:[%s1 + $0x30] sm:$0xff]
    %v23 = vld [vmem:[%s1 + $0x38] sm:$0xff]
    %v24 = vld [vmem:[%s1 + $0x40] sm:$0xff]
    %v25 = vld [vmem:[%s1 + $0x48] sm:$0xff]
    %v26 = vld [vmem:[%s1 + $0x50] sm:$0xff]
    %v27 = vld [vmem:[%s1 + $0x58] sm:$0xff]
    %v28 = vld [vmem:[%s1 + $0x60] sm:$0xff]
    %v29 = vld [vmem:[%s1 + $0x68] sm:$0xff]
    %v30 = vld [vmem:[%s1 + $0x70] sm:$0xff]
    %v31 = vld [vmem:[%s1 + $0x78] sm:$0xff]
    %v32 = vld [vmem:[%s2] sm:$0x1]
    %v34 = vlaneseq
    %v35 = vshrl.u32 %v34, 7
    %v36 = vsub.s32 0, %v35
    %v37 = vrot.slane %v32, %v36
    %39 = vmatprep.subr.mxu0 0.0
    %40 = vmatpush1.xpose.msra.mxu0 %v31
    %41 = vmatprep.subr.mxu0 0.0
    %42 = vmatpush1.xpose.msra.mxu0 %v30
    %43 = vmatprep.subr.mxu0 0.0
    %44 = vmatpush1.xpose.msra.mxu0 %v29
    %45 = vmatprep.subr.mxu0 0.0
    %46 = vmatpush1.xpose.msra.mxu0 %v28
    %47 = vmatprep.subr.mxu0 0.0
    %48 = vmatpush1.xpose.msra.mxu0 %v27
    %49 = vmatprep.subr.mxu0 0.0
    %50 = vmatpush1.xpose.msra.mxu0 %v26
    %51 = vmatprep.subr.mxu0 0.0
    %52 = vmatpush1.xpose.msra.mxu0 %v25
    %53 = vmatprep.subr.mxu0 0.0
    %54 = vmatpush1.xpose.msra.mxu0 %v24
    %55 = vmatprep.subr.mxu0 0.0
    %56 = vmatpush1.xpose.msra.mxu0 %v23
    %57 = vmatprep.subr.mxu0 0.0
    %58 = vmatpush1.xpose.msra.mxu0 %v22
    %59 = vmatprep.subr.mxu0 0.0
    %60 = vmatpush1.xpose.msra.mxu0 %v21
    %61 = vmatprep.subr.mxu0 0.0
    %62 = vmatpush1.xpose.msra.mxu0 %v20
    %63 = vmatprep.subr.mxu0 0.0
    %64 = vmatpush1.xpose.msra.mxu0 %v19
    %65 = vmatprep.subr.mxu0 0.0
    %66 = vmatpush1.xpose.msra.mxu0 %v18
    %67 = vmatprep.subr.mxu0 0.0
    %68 = vmatpush1.xpose.msra.mxu0 %v17
    %69 = vmatprep.subr.mxu0 0.0
    %70 = vmatpush1.xpose.msra.mxu0 %v16
    %71 = vmatprep.subr.mxu0 0.0
    %72 = vmatpush2.xpose.msra.mxu0 0.0
    %73 = vmatprep.subr.mxu0 0.0
    %74 = vmatpush2.xpose.msra.mxu0 0.0
    %75 = vmatprep.subr.mxu0 0.0
    %76 = vmatpush2.xpose.msra.mxu0 0.0
    %77 = vmatprep.subr.mxu0 0.0
    %78 = vmatpush2.xpose.msra.mxu0 0.0
    %79 = vmatprep.subr.mxu0 0.0
    %80 = vmatpush2.xpose.msra.mxu0 0.0
    %81 = vmatprep.subr.mxu0 0.0
    %82 = vmatpush2.xpose.msra.mxu0 0.0
    %83 = vmatprep.subr.mxu0 0.0
    %84 = vmatpush2.xpose.msra.mxu0 0.0
    %85 = vmatprep.subr.mxu0 0.0
    %86 = vmatpush2.xpose.msra.mxu0 0.0
    %87 = vmatprep.subr.mxu0 0.0
    %88 = vmatpush2.xpose.msra.mxu0 0.0
    %89 = vmatprep.subr.mxu0 0.0
    %90 = vmatpush2.xpose.msra.mxu0 0.0
    %91 = vmatprep.subr.mxu0 0.0
    %92 = vmatpush2.xpose.msra.mxu0 0.0
    %93 = vmatprep.subr.mxu0 0.0
    %94 = vmatpush2.xpose.msra.mxu0 0.0
    %95 = vmatprep.subr.mxu0 0.0
    %96 = vmatpush2.xpose.msra.mxu0 0.0
    %97 = vmatprep.subr.mxu0 0.0
    %98 = vmatpush2.xpose.msra.mxu0 0.0
    %99 = vmatprep.subr.mxu0 0.0
    %100 = vmatpush2.xpose.msra.mxu0 0.0
    %101 = vmatprep.subr.mxu0 0.0
    %102 = vmatpush2.xpose.msra.mxu0 0.0
    %103 = vmatprep.mubr.f32.mxu0 0.0
    %104 = vmatmul.mubr.f32.gmra.mxu0 %v15
    %v105 = vpop.f32.mrf.mxu0
    %v106 = vadd.f32 %v37, %v105
    %v107 = vpop.f32.mrf.mxu0
    %108 = vdwg.mxu0
    %109 = vst [vmem:[#allocation2] sm:$0xff] %v106
    // Predicated region
    $region14: #{sum2_linear.1} parent=1 // pred_check
      _
    $region15: #{sum2_linear.1} parent=1 // pred_check_branch
      %111 = sbr.rel (0) target = $region17
    $region16: #{sum2_linear.1} parent=1 // pred_region
      %s113 = ssub.s32 128, 128
      %114 = vsyncadd [#allocation3], %s113
      %s116 = sshll.u32 [#allocation2], 4
      %s117 = int_to_ptr.vmem [resolvable:$true] %s116
      %119 = dma.vmem_to_hbm [thread:$0]  %s117, 128, %s3, [#allocation3]
    $region17: #{sum2_linear.1} parent=1 // pred_fallthru
      _
    // Predicated region
    $region18: #{sum2_linear.1} parent=1 // pred_check
      _
    $region19: #{sum2_linear.1} parent=1 // pred_check_branch
      %121 = sbr.rel (0) target = $region21
    $region20: #{sum2_linear.1} parent=1 // pred_region
      %122 = dma.done [#allocation3], 128
    $region21: #{sum2_linear.1} parent=1 // pred_fallthru
      _
    %123 = vsyncpa [#allocation3], 1

</llo_original>
